<compile_context>
chip_gen: v5e
topology: v5e:2x2
jax: 0.10.0
libtpu: 0.0.40
codegen_flags: <defaults>
</compile_context>

<pallas_src>
from typing import NamedTuple

import jax
import jax.numpy as jnp
from jax.experimental import pallas as pl
from jax.experimental.pallas import tpu as pltpu


def _round_up(x, m):
    return (x + m - 1) // m * m


def _vmem_budget_bytes():
    """Generation-aware scoped-VMEM cap (v5e/v6e: 128 MiB phys, v7x: 64 MiB)."""
    phys = 128 << 20
    try:
        phys = int(pltpu.get_tpu_info().vmem_capacity_bytes)
    except Exception:
        pass  # fall back to the conservative 128 MiB assumption
    return int(min(phys * 3 // 4, 100 << 20))


# --------------------------------------------------------------------------
# Kernels
# --------------------------------------------------------------------------
def _pool_kernel(x_ref, w_pool_ref, b_pool_ref, h_ref):
    # pooling_layer + Tanh: f32 accumulation, f32 bias + tanh (EUP), bf16 out.
    h = jnp.dot(x_ref[...], w_pool_ref[...], preferred_element_type=jnp.float32)
    h_ref[...] = jnp.tanh(h + b_pool_ref[...]).astype(h_ref.dtype)
    # dropout: eval-mode identity.
    # TODO(synk): training-mode dropout would need pltpu.prng_seed +
    # pltpu.stateful_bernoulli masking here.


def _cls_kernel(h_ref, w_cls_ref, b_cls_ref, o_ref):
    # classifier: f32 accumulation, f32 bias, cast to output dtype.
    acc = jnp.dot(h_ref[...], w_cls_ref[...], preferred_element_type=jnp.float32)
    o_ref[...] = (acc + b_cls_ref[...]).astype(o_ref.dtype)


# --------------------------------------------------------------------------
# Parameter preparation (hoisted off the per-call hot path)
# --------------------------------------------------------------------------
class HeadParams(NamedTuple):
    w_pool_t: jax.Array      # (D, D)      bf16, pre-transposed (in, out)
    b_pool: jax.Array        # (1, D)      f32
    w_cls_t: jax.Array       # (D, V_pad)  bf16, pre-transposed + vocab-padded
    b_cls: jax.Array         # (1, V_pad)  f32, vocab-padded
    d_model: int
    vocab_size: int
    tile_n: int
    tile_m_max: int
    out_dtype: jnp.dtype


def _choose_cls_tiles(D, V, out_isz, vmem_cap, max_tile_m):
    """Pick lane-dense classifier tiles whose double-buffered footprint fits."""
    tile_m = max(16, min(int(max_tile_m), 512))
    tile_n = min(4096, _round_up(V, 128))

    def footprint(tm, tn):
        return (2 * D * tn * 2          # W_cls tile (bf16), double-buffered
                + 2 * tm * D * 2        # h tile (bf16), double-buffered
                + 2 * tn * 4            # b_cls tile (f32), double-buffered
                + 2 * tm * tn * out_isz)  # logits tile, double-buffered

    while tile_n > 256 and footprint(tile_m, tile_n) > vmem_cap:
        tile_n //= 2
    while tile_m > 16 and footprint(tile_m, tile_n) > vmem_cap:
        tile_m //= 2
    return tile_m, tile_n


def prepare_head_params(w_pool, b_pool, w_cls, b_cls, *,
                        out_dtype=jnp.float32, max_tile_m=512,
                        compute_dtype=jnp.bfloat16):
    """Transpose / cast / pad the head weights ONCE (init time, not per call).

    w_pool: (D, D) PyTorch Linear weight (out, in);  b_pool: (D,)
    w_cls:  (V, D) PyTorch Linear weight (out, in);  b_cls:  (V,)
    """
    D = int(w_pool.shape[1])
    V = int(w_cls.shape[0])
    out_isz = jnp.dtype(out_dtype).itemsize
    vmem_cap = _vmem_budget_bytes()
    tile_m_max, tile_n = _choose_cls_tiles(D, V, out_isz, vmem_cap, max_tile_m)
    V_pad = _round_up(V, tile_n)

    w_pool_t = jnp.asarray(w_pool).T.astype(compute_dtype)          # (D, D)
    b_pool2 = jnp.asarray(b_pool, jnp.float32).reshape(1, D)        # (1, D)
    w_cls_t = jnp.asarray(w_cls).T.astype(compute_dtype)            # (D, V)
    b_cls2 = jnp.asarray(b_cls, jnp.float32).reshape(1, V)          # (1, V)
    if V_pad != V:
        w_cls_t = jnp.pad(w_cls_t, ((0, 0), (0, V_pad - V)))
        b_cls2 = jnp.pad(b_cls2, ((0, 0), (0, V_pad - V)))

    return HeadParams(w_pool_t, b_pool2, w_cls_t, b_cls2,
                      D, V, tile_n, tile_m_max, jnp.dtype(out_dtype))


# --------------------------------------------------------------------------
# Forward
# --------------------------------------------------------------------------
def bimamba_mlm_presence_head(pooled_output, params: HeadParams):
    """pooled_output: (B, D) float. Returns logits (B, vocab_size)."""
    B, D = pooled_output.shape
    assert D == params.d_model, "d_model mismatch"
    V = params.vocab_size
    V_pad = params.w_cls_t.shape[1]
    out_dtype = params.out_dtype
    out_isz = jnp.dtype(out_dtype).itemsize
    cdt = params.w_pool_t.dtype

    tile_m = min(params.tile_m_max, _round_up(B, 16))
    B_pad = _round_up(B, tile_m)
    tile_n = params.tile_n
    nr = B_pad // tile_m
    nv = V_pad // tile_n
    vmem_cap = _vmem_budget_bytes()

    x = pooled_output.astype(cdt)
    if B_pad != B:
        x = jnp.pad(x, ((0, B_pad - B), (0, 0)))

    # ---- Kernel 1: pooling_layer + Tanh -------------------------------------
    # W_pool / b_pool use a constant block index, so Pallas fetches them once;
    # the pooling kernel's VMEM footprint is tiny (it no longer competes with
    # the W_cls stream, which lives in its own pallas_call below).
    pool_bytes = (2 * tile_m * D * 2      # x tile (bf16), double-buffered
                  + 2 * D * D * 2         # W_pool (constant block)
                  + 2 * D * 4             # b_pool
                  + 2 * tile_m * D * 2)   # h tile out
    pool_vmem = int(min(max(pool_bytes + (4 << 20), 16 << 20), vmem_cap))
    pool_cost = pl.CostEstimate(
        flops=2 * B_pad * D * D,
        transcendentals=B_pad * D,
        bytes_accessed=2 * B_pad * D * 2 + D * D * 2 + D * 4)

    h = pl.pallas_call(
        _pool_kernel,
        out_shape=jax.ShapeDtypeStruct((B_pad, D), cdt),
        grid_spec=pltpu.PrefetchScalarGridSpec(
            num_scalar_prefetch=0,
            grid=(nr,),
            in_specs=[
                pl.BlockSpec((tile_m, D), lambda i: (i, 0)),   # x row tile
                pl.BlockSpec((D, D), lambda i: (0, 0)),        # W_pool^T (const)
                pl.BlockSpec((1, D), lambda i: (0, 0)),        # b_pool (const)
            ],
            out_specs=pl.BlockSpec((tile_m, D), lambda i: (i, 0)),
        ),
        compiler_params=pltpu.CompilerParams(
            dimension_semantics=("parallel",),
            vmem_limit_bytes=pool_vmem),
        cost_estimate=pool_cost,
    )(x, params.w_pool_t, params.b_pool)

    # ---- Kernel 2: classifier ------------------------------------------------
    # Grid = (vocab tiles, row tiles): the vocab axis is OUTER, so the
    # (D, tile_n) W_cls block only changes when the outer index changes and is
    # therefore read from HBM exactly once.  Both axes are independent output
    # tiles -> both "parallel" (megacore-shardable even when nr == 1).
    cls_bytes = (2 * D * tile_n * 2           # W_cls tile (bf16)
                 + 2 * tile_m * D * 2         # h tile (bf16)
                 + 2 * tile_n * 4             # b_cls tile (f32)
                 + 2 * tile_m * tile_n * out_isz)
    cls_vmem = int(min(max(cls_bytes + (4 << 20), 16 << 20), vmem_cap))
    cls_cost = pl.CostEstimate(
        flops=2 * B_pad * D * V_pad,
        transcendentals=0,
        bytes_accessed=(D * V_pad * 2          # W_cls read once (vocab-outer)
                        + nv * B_pad * D * 2   # h re-read per vocab tile
                        + V_pad * 4            # b_cls
                        + B_pad * V_pad * out_isz))

    logits = pl.pallas_call(
        _cls_kernel,
        out_shape=jax.ShapeDtypeStruct((B_pad, V_pad), out_dtype),
        grid_spec=pltpu.PrefetchScalarGridSpec(
            num_scalar_prefetch=0,
            grid=(nv, nr),
            in_specs=[
                pl.BlockSpec((tile_m, D), lambda j, i: (i, 0)),    # h row tile
                pl.BlockSpec((D, tile_n), lambda j, i: (0, j)),    # W_cls^T vocab tile
                pl.BlockSpec((1, tile_n), lambda j, i: (0, j)),    # b_cls vocab tile
            ],
            out_specs=pl.BlockSpec((tile_m, tile_n), lambda j, i: (i, j)),
        ),
        compiler_params=pltpu.CompilerParams(
            dimension_semantics=("parallel", "parallel"),
            vmem_limit_bytes=cls_vmem),
        cost_estimate=cls_cost,
    )(h, params.w_cls_t, params.b_cls)

    if B_pad != B or V_pad != V:
        logits = logits[:B, :V]
    return logits


# --------------------------------------------------------------------------
# Reference (mirrors the kernel numerics: bf16 matmul inputs, f32 accumulation,
# f32 bias/tanh, bf16 re-cast of h before the classifier matmul).
# --------------------------------------------------------------------------
def reference_forward(pooled_output, w_pool, b_pool, w_cls, b_cls):
    f32 = jnp.float32
    x = pooled_output.astype(jnp.bfloat16).astype(f32)
    wp = jnp.asarray(w_pool).T.astype(jnp.bfloat16).astype(f32)
    wc = jnp.asarray(w_cls).T.astype(jnp.bfloat16).astype(f32)
    h = jnp.tanh(x @ wp + b_pool.astype(f32))
    h = h.astype(jnp.bfloat16).astype(f32)
    return h @ wc + b_cls.astype(f32)


if __name__ == "__main__":
    # Small config consistent with the module: d_model=128, vocab_size=256, batch=8.
    B, D, V = 8, 128, 256
    key = jax.random.PRNGKey(0)
    k_x, k_wp, k_bp, k_wc, k_bc = jax.random.split(key, 5)

    pooled_output = jax.random.normal(k_x, (B, D), dtype=jnp.float32)

    # PyTorch Linear params: weight (out, in), bias (out,)
    bound = 1.0 / (D ** 0.5)
    w_pool = jax.random.uniform(k_wp, (D, D), jnp.float32, -bound, bound)
    b_pool = jax.random.uniform(k_bp, (D,), jnp.float32, -bound, bound)
    w_cls = jax.random.uniform(k_wc, (V, D), jnp.float32, -bound, bound)
    b_cls = jax.random.uniform(k_bc, (V,), jnp.float32, -bound, bound)

    # One-time weight preparation (transpose / bf16 cast / vocab pad) — this is
    # the init-time path, not the per-forward hot path.
    params = prepare_head_params(w_pool, b_pool, w_cls, b_cls,
                                 out_dtype=jnp.float32)

    logits = bimamba_mlm_presence_head(pooled_output, params)
    logits = jax.block_until_ready(logits)

    ref = reference_forward(pooled_output, w_pool, b_pool, w_cls, b_cls)
    assert logits.shape == (B, V)
    assert jnp.allclose(logits.astype(jnp.float32), ref, atol=1e-2, rtol=1e-2), \
        "mismatch vs reference"
    print("KERNEL_OK")
</pallas_src>

<mosaic_0001>
module attributes {stable_mosaic.version = 11 : i64} {
  func.func @_pool_kernel(%arg0: i32, %arg1: memref<16x128xbf16, #tpu.memory_space<vmem>>, %arg2: memref<128x128xbf16, #tpu.memory_space<vmem>>, %arg3: memref<1x128xf32, #tpu.memory_space<vmem>>, %arg4: memref<16x128xbf16, #tpu.memory_space<vmem>>) attributes {dimension_semantics = [#tpu.dimension_semantics<parallel>], iteration_bounds = array<i64: 1>, scalar_prefetch = 0 : i64, scratch_operands = 0 : i64, tpu.core_type = #tpu.core_type<tc>, window_params = [{transform_indices = @transform_0, window_bounds = array<i64: 16, 128>}, {pipeline_mode = #tpu.pipeline_mode<synchronous>, transform_indices = @transform_1, window_bounds = array<i64: 128, 128>}, {pipeline_mode = #tpu.pipeline_mode<synchronous>, transform_indices = @transform_2, window_bounds = array<i64: 1, 128>}, {transform_indices = @transform_3, window_bounds = array<i64: 16, 128>}]} {
    %c0 = arith.constant 0 : index
    %c0_0 = arith.constant 0 : index
    %0 = vector.load %arg1[%c0, %c0_0] : memref<16x128xbf16, #tpu.memory_space<vmem>>, vector<16x128xbf16>
    %c0_1 = arith.constant 0 : index
    %c0_2 = arith.constant 0 : index
    %1 = vector.load %arg2[%c0_1, %c0_2] : memref<128x128xbf16, #tpu.memory_space<vmem>>, vector<128x128xbf16>
    %cst = arith.constant dense<0.000000e+00> : vector<16x128xf32>
    %2 = tpu.matmul %0, %1, %cst {dimension_numbers = #tpu.dot_dimension_numbers<[1], [0], [0], [1], [0, 0, 1, 1], [], []>} : vector<16x128xbf16>, vector<128x128xbf16>, vector<16x128xf32> -> vector<16x128xf32>
    %c0_3 = arith.constant 0 : index
    %c0_4 = arith.constant 0 : index
    %3 = vector.load %arg3[%c0_3, %c0_4] : memref<1x128xf32, #tpu.memory_space<vmem>>, vector<1x128xf32>
    %4 = vector.broadcast %3 : vector<1x128xf32> to vector<16x128xf32>
    %5 = arith.addf %2, %4 : vector<16x128xf32>
    %6 = math.tanh %5 : vector<16x128xf32>
    %7 = arith.truncf %6 : vector<16x128xf32> to vector<16x128xbf16>
    %c0_5 = arith.constant 0 : index
    %c0_6 = arith.constant 0 : index
    %8 = vector.load %arg4[%c0_5, %c0_6] : memref<16x128xbf16, #tpu.memory_space<vmem>>, vector<16x128xbf16>
    tpu.vector_store %arg4[%c0_5, %c0_6], %7 {strides = array<i32>} : memref<16x128xbf16, #tpu.memory_space<vmem>>, vector<16x128xbf16>,
    return
  }
  func.func @transform_0(%arg0: i32) -> (i32, i32) {
    %c0_i32 = arith.constant 0 : i32
    %c0_i32_0 = arith.constant 0 : i32
    return %arg0, %c0_i32 : i32, i32
  }
  func.func @transform_1(%arg0: i32) -> (i32, i32) {
    %c0_i32 = arith.constant 0 : i32
    %c0_i32_0 = arith.constant 0 : i32
    %c0_i32_1 = arith.constant 0 : i32
    return %c0_i32, %c0_i32_0 : i32, i32
  }
  func.func @transform_2(%arg0: i32) -> (i32, i32) {
    %c0_i32 = arith.constant 0 : i32
    %c0_i32_0 = arith.constant 0 : i32
    %c0_i32_1 = arith.constant 0 : i32
    return %c0_i32, %c0_i32_0 : i32, i32
  }
  func.func @transform_3(%arg0: i32) -> (i32, i32) {
    %c0_i32 = arith.constant 0 : i32
    %c0_i32_0 = arith.constant 0 : i32
    return %arg0, %c0_i32 : i32, i32
  }
}

</mosaic_0001>

<llo_original>
// kernel: tpu_custom_call.1
$region0: #{tpu_custom_call.1}
  #allocation0 [shape = 'u32[]', space=smem, size = 0x4, offset = 0x4, fixed_abs, tag = 'smem constant byte address 0x4 - core index']
  #allocation1 [shape = 'u32[72,128]{1,0:T(1,128)}', space=vmem, size = 0x9000, scoped, tag = 'internal scratch']
  %s0 = inlined_call_operand.hbm [shape: bf16[16,128], index: 0, kind: input, shape index: {}]
  %s1 = inlined_call_operand.hbm [shape: bf16[128,128], index: 1, kind: input, shape index: {}]
  %s2 = inlined_call_operand.vmem [shape: f32[1,128], index: 2, kind: input, shape index: {}]
  %s3 = inlined_call_operand.hbm [shape: bf16[16,128], index: 3, kind: output, shape index: {}]
  %s4 = sld [smem:[#allocation0]]
  $region30: #{tpu_custom_call.1} parent=0
    _
  %s6 = ssub.s32 1, %s4
  %s7 = scalar_select 0, %s6, %s4
  $region1: #{tpu_custom_call.1} parent=0
    #allocation2 [shape = 'u8[4096]{0}', space=vmem, size = 0x1000, scoped, tag = 'input window, operand 0, single buffered']
    #allocation3 [shape = 's32[1]{0}', space=sflag, size = 0x4, scoped, tag = 'scoped memory for tpu_custom_call.1']
    #allocation4 [shape = 's32[1]{0}', space=sflag, size = 0x4, scoped, tag = 'scoped memory for tpu_custom_call.1']
    #allocation5 [shape = 'u8[32768]{0}', space=vmem, size = 0x8000, scoped, tag = 'input window, operand 1, single buffered']
    #allocation6 [shape = 's32[1]{0}', space=sflag, size = 0x4, scoped, tag = 'scoped memory for tpu_custom_call.1']
    #allocation7 [shape = 'u8[4096]{0}', space=vmem, size = 0x1000, scoped, tag = 'output window, operand 0, single buffered']
    %8 = vsyncpa [#allocation3], 0
    %9 = vsyncpa [#allocation6], 0
    %10 = vsyncpa [#allocation4], 0
    // Predicated region
    $region2: #{tpu_custom_call.1} parent=1 // pred_check
      _
    $region3: #{tpu_custom_call.1} parent=1 // pred_check_branch
      %12 = sbr.rel (0) target = $region5
    $region4: #{tpu_custom_call.1} parent=1 // pred_region
      %14 = vsyncadd [#allocation3], 0
      %s15 = sshll.u32 %s0, 4
      %s16 = int_to_ptr.hbm [resolvable:$true] %s15
      %s17 = sshll.u32 [#allocation2], 4
      %s18 = int_to_ptr.vmem [resolvable:$true] %s17
      %23 = dma.hbm_to_vmem [thread:$0]  %s16, 128, %s18, [#allocation3], 64, 64, 4
    $region5: #{tpu_custom_call.1} parent=1 // pred_fallthru
      _
    // Predicated region
    $region6: #{tpu_custom_call.1} parent=1 // pred_check
      _
    $region7: #{tpu_custom_call.1} parent=1 // pred_check_branch
      %25 = sbr.rel (0) target = $region9
    $region8: #{tpu_custom_call.1} parent=1 // pred_region
      %27 = vsyncadd [#allocation6], 0
      %s28 = sshll.u32 %s1, 4
      %s29 = int_to_ptr.hbm [resolvable:$true] %s28
      %s30 = sshll.u32 [#allocation5], 4
      %s31 = int_to_ptr.vmem [resolvable:$true] %s30
      %36 = dma.hbm_to_vmem [thread:$0]  %s29, 1024, %s31, [#allocation6], 64, 64, 4
    $region9: #{tpu_custom_call.1} parent=1 // pred_fallthru
      _
    // Predicated region
    $region10: #{tpu_custom_call.1} parent=1 // pred_check
      _
    $region11: #{tpu_custom_call.1} parent=1 // pred_check_branch
      %38 = sbr.rel (0) target = $region13
    $region12: #{tpu_custom_call.1} parent=1 // pred_region
      _
    $region13: #{tpu_custom_call.1} parent=1 // pred_fallthru
      _
    // Predicated region
    $region14: #{tpu_custom_call.1} parent=1 // pred_check
      _
    $region15: #{tpu_custom_call.1} parent=1 // pred_check_branch
      %40 = sbr.rel (0) target = $region17
    $region16: #{tpu_custom_call.1} parent=1 // pred_region
      %42 = dma.done [#allocation3], 128
    $region17: #{tpu_custom_call.1} parent=1 // pred_fallthru
      _
    // Predicated region
    $region18: #{tpu_custom_call.1} parent=1 // pred_check
      _
    $region19: #{tpu_custom_call.1} parent=1 // pred_check_branch
      %44 = sbr.rel (0) target = $region21
    $region20: #{tpu_custom_call.1} parent=1 // pred_region
      %46 = dma.done [#allocation6], 1024
    $region21: #{tpu_custom_call.1} parent=1 // pred_fallthru
      _
    %v47 = vld [vmem:[#allocation2] sm:$0xf]
    %v48 = vld [vmem:[#allocation2 + $0x4] sm:$0xf]
    %v49 = vld [vmem:[#allocation5] sm:$0xf]
    %v50 = vld [vmem:[#allocation5 + $0x4] sm:$0xf]
    %v51 = vld [vmem:[#allocation5 + $0x8] sm:$0xf]
    %v52 = vld [vmem:[#allocation5 + $0xc] sm:$0xf]
    %v53 = vld [vmem:[#allocation5 + $0x10] sm:$0xf]
    %v54 = vld [vmem:[#allocation5 + $0x14] sm:$0xf]
    %v55 = vld [vmem:[#allocation5 + $0x18] sm:$0xf]
    %v56 = vld [vmem:[#allocation5 + $0x1c] sm:$0xf]
    %v57 = vld [vmem:[#allocation5 + $0x20] sm:$0xf]
    %v58 = vld [vmem:[#allocation5 + $0x24] sm:$0xf]
    %v59 = vld [vmem:[#allocation5 + $0x28] sm:$0xf]
    %v60 = vld [vmem:[#allocation5 + $0x2c] sm:$0xf]
    %v61 = vld [vmem:[#allocation5 + $0x30] sm:$0xf]
    %v62 = vld [vmem:[#allocation5 + $0x34] sm:$0xf]
    %v63 = vld [vmem:[#allocation5 + $0x38] sm:$0xf]
    %v64 = vld [vmem:[#allocation5 + $0x3c] sm:$0xf]
    %v65 = vld [vmem:[%s2] sm:$0x1]
    %v67 = vperm.slane %v65, 0
    %v71 = vunpack.c.l.b16 %v47
    %v72 = vunpack.c.l.b16 %v48
    %v73 = vpack.c.b16 %v72, %v71
    %v91 = vunpack.c.l.b16 %v49
    %v92 = vunpack.c.l.b16 %v50
    %v93 = vunpack.c.l.b16 %v51
    %v94 = vunpack.c.l.b16 %v52
    %v95 = vunpack.c.l.b16 %v53
    %v96 = vunpack.c.l.b16 %v54
    %v97 = vunpack.c.l.b16 %v55
    %v98 = vunpack.c.l.b16 %v56
    %v99 = vunpack.c.l.b16 %v57
    %v100 = vunpack.c.l.b16 %v58
    %v101 = vunpack.c.l.b16 %v59
    %v102 = vunpack.c.l.b16 %v60
    %v103 = vunpack.c.l.b16 %v61
    %v104 = vunpack.c.l.b16 %v62
    %v105 = vunpack.c.l.b16 %v63
    %v106 = vunpack.c.l.b16 %v64
    %v107 = vpack.c.b16 %v92, %v91
    %v108 = vpack.c.b16 %v94, %v93
    %v109 = vpack.c.b16 %v96, %v95
    %v110 = vpack.c.b16 %v98, %v97
    %v111 = vpack.c.b16 %v100, %v99
    %v112 = vpack.c.b16 %v102, %v101
    %v113 = vpack.c.b16 %v104, %v103
    %v114 = vpack.c.b16 %v106, %v105
    %123 = vmatpush.bf16.msra.mxu0 %v114
    %124 = vmatpush.bf16.msra.mxu0 %v113
    %125 = vmatpush.bf16.msra.mxu0 %v112
    %126 = vmatpush.bf16.msra.mxu0 %v111
    %127 = vmatpush.bf16.msra.mxu0 %v110
    %128 = vmatpush.bf16.msra.mxu0 %v109
    %129 = vmatpush.bf16.msra.mxu0 %v108
    %130 = vmatpush.bf16.msra.mxu0 %v107
    %131 = vmatmul.bf16.gmra.mxu0 %v73
    %v132 = vpop.f32.mrf.mxu0
    %v133 = vadd.f32 %v67, %v132
    %v134 = vpop.f32.mrf.mxu0
    %v135 = vadd.f32 %v67, %v134
    %136 = vdwg.mxu0
    %v137 = vtanh.pop %v133
    %v138 = vtanh.pop %v135
    %v139 = vpack.c.bf16 %v137, %v137
    %v140 = vpack.c.bf16 %v138, %v138
    %141 = vst [vmem:[#allocation7] sm:$0xf] %v139
    %142 = vst [vmem:[#allocation7 + $0x4] sm:$0xf] %v140
    // Predicated region
    $region22: #{tpu_custom_call.1} parent=1 // pred_check
      _
    $region23: #{tpu_custom_call.1} parent=1 // pred_check_branch
      %144 = sbr.rel (0) target = $region25
    $region24: #{tpu_custom_call.1} parent=1 // pred_region
      %146 = vsyncadd [#allocation4], 0
      %s147 = sshll.u32 [#allocation7], 4
      %s148 = int_to_ptr.vmem [resolvable:$true] %s147
      %s149 = sshll.u32 %s3, 4
      %s150 = int_to_ptr.hbm [resolvable:$true] %s149
      %155 = dma.vmem_to_hbm [thread:$0]  %s148, 128, %s150, [#allocation4], 64, 64, 4
    $region25: #{tpu_custom_call.1} parent=1 // pred_fallthru
      _
    // Predicated region
    $region26: #{tpu_custom_call.1} parent=1 // pred_check
      _
    $region27: #{tpu_custom_call.1} parent=1 // pred_check_branch
      %157 = sbr.rel (0) target = $region29
    $region28: #{tpu_custom_call.1} parent=1 // pred_region
      %159 = dma.done [#allocation4], 128
    $region29: #{tpu_custom_call.1} parent=1 // pred_fallthru
      _
    %160 = vsyncpa [#allocation3], 1
    %161 = vsyncpa [#allocation6], 1
    %162 = vsyncpa [#allocation4], 1

</llo_original>
